<compile_context>
chip_gen: v6e
topology: v6e:2x2x1
jax: 0.10.0
libtpu: 0.0.40
codegen_flags: <defaults>
</compile_context>

<pallas_src>
import functools

import jax
import jax.numpy as jnp
from jax.experimental import pallas as pl
from jax.experimental.pallas import tpu as pltpu

EPS = 1e-5


# ---------------------------------------------------------------------------
# Kernel 1: synthetic backbone stem (1x1 conv + ReLU + global average pool).
# TODO(synk): real base_encoder (ResNet conv trunk) has no compact Pallas
#             equivalent here; a 1x1-conv stem + GAP stands in for it.
#   grid = (N // BT,)  — BT samples per grid step (dense (BT, F) output slab).
#   x_ref: (BT, HW, C)   w_ref: (C, F)   feat_ref: (BT, F)
# ---------------------------------------------------------------------------
def _stem_kernel(x_ref, w_ref, feat_ref):
    bt, hw, c = x_ref.shape
    x2 = x_ref[...].reshape(bt * hw, c)                       # one row-batched matmul
    h = jnp.dot(x2, w_ref[...], preferred_element_type=jnp.float32)
    h = jnp.maximum(h, 0.0)                                   # ReLU
    h = h.reshape(bt, hw, -1)
    feat_ref[...] = jnp.mean(h, axis=1).astype(feat_ref.dtype)   # GAP -> (BT, F)


def backbone_stem(x_flat, w_stem, *, out_dtype=jnp.bfloat16):
    # x_flat: [N, HW, C] (channels-last, spatial flattened), w_stem: [C, F] -> [N, F]
    n, hw, c = x_flat.shape
    f = w_stem.shape[1]
    bt = n if n < 8 else 8
    while n % bt:
        bt -= 1
    return pl.pallas_call(
        _stem_kernel,
        out_shape=jax.ShapeDtypeStruct((n, f), out_dtype),
        grid_spec=pltpu.PrefetchScalarGridSpec(
            num_scalar_prefetch=0,
            grid=(n // bt,),
            in_specs=[
                pl.BlockSpec((bt, hw, c), lambda i: (i, 0, 0)),
                pl.BlockSpec((c, f), lambda i: (0, 0)),
            ],
            out_specs=pl.BlockSpec((bt, f), lambda i: (i, 0)),
        ),
        compiler_params=pltpu.CompilerParams(
            dimension_semantics=("parallel",)),
    )(x_flat, w_stem)


# ---------------------------------------------------------------------------
# Kernel 2: fused Linear (bf16 MXU) + BatchNorm1d (+ optional affine, ReLU).
#   grid = (num_feature_tiles, num_k_tiles)  — accumulator pattern over K.
#   Full batch in every tile  ->  BN batch statistics are exact per feature.
# ---------------------------------------------------------------------------
def _linear_bn_kernel(x_ref, w_ref, g_ref, b_ref, o_ref, acc_ref,
                      *, apply_affine, apply_relu, inv_n):
    k = pl.program_id(1)

    @pl.when(k == 0)
    def _():
        acc_ref[...] = jnp.zeros_like(acc_ref)

    acc_ref[...] += jnp.dot(x_ref[...], w_ref[...],
                            preferred_element_type=jnp.float32)

    @pl.when(k == pl.num_programs(1) - 1)
    def _():
        h = acc_ref[...]                                     # (N, tn) fp32
        # BatchNorm1d, training-mode batch stats, single pass (sum / sum-of-sq),
        # biased variance, eps=1e-5.  Kept in fp32 for v5e (no bf16 VPU/EUP).
        mu = jnp.sum(h, axis=0, keepdims=True) * inv_n
        var = jnp.sum(h * h, axis=0, keepdims=True) * inv_n - mu * mu
        var = jnp.maximum(var, 0.0)
        hn = (h - mu) * jax.lax.rsqrt(var + EPS)
        if apply_affine:
            hn = hn * g_ref[...] + b_ref[...]
        if apply_relu:
            hn = jnp.maximum(hn, 0.0)
        o_ref[...] = hn.astype(o_ref.dtype)


def _pick_tile(dim, cap=512):
    """Largest tile <= cap that divides dim; full dim if it already fits."""
    if dim <= cap:
        return dim
    for t in range(cap, 0, -128):
        if t > 0 and dim % t == 0:
            return t
    return dim


def fused_linear_bn(x, w, gamma, beta, *, relu, affine, out_dtype):
    n, kd = x.shape
    nd = w.shape[1]
    tk = _pick_tile(kd)
    tn = _pick_tile(nd)
    kt, nt = kd // tk, nd // tn

    w_kwargs = {}
    if kt > 2:
        # Deeper weight-stream pipelining once K is tiled (hides HBM fetch).
        w_kwargs["pipeline_mode"] = pl.Buffered(3)

    # Explicit scoped-VMEM budget: ~triple-buffered tiles + fp32 accumulator.
    per_step = (n * tk * x.dtype.itemsize
                + tk * tn * w.dtype.itemsize
                + 2 * tn * 4
                + n * tn * jnp.dtype(out_dtype).itemsize)
    vmem_limit = int(min(max(3 * per_step + n * tn * 4 + (2 << 20), 4 << 20),
                         48 << 20))

    kernel = functools.partial(_linear_bn_kernel, apply_affine=affine,
                               apply_relu=relu, inv_n=1.0 / n)
    return pl.pallas_call(
        kernel,
        out_shape=jax.ShapeDtypeStruct((n, nd), out_dtype),
        grid_spec=pltpu.PrefetchScalarGridSpec(
            num_scalar_prefetch=0,
            grid=(nt, kt),
            in_specs=[
                pl.BlockSpec((n, tk), lambda j, k: (0, k)),
                pl.BlockSpec((tk, tn), lambda j, k: (k, j), **w_kwargs),
                pl.BlockSpec((1, tn), lambda j, k: (0, j)),
                pl.BlockSpec((1, tn), lambda j, k: (0, j)),
            ],
            out_specs=pl.BlockSpec((n, tn), lambda j, k: (0, j)),
            scratch_shapes=[pltpu.VMEM((n, tn), jnp.float32)],
        ),
        compiler_params=pltpu.CompilerParams(
            dimension_semantics=("parallel", "arbitrary"),
            vmem_limit_bytes=vmem_limit),
    )(x, w, gamma, beta)


# ---------------------------------------------------------------------------
# SimSiam forward = encoder(x1)
# ---------------------------------------------------------------------------
def simsiam_forward(x_nchw, params):
    n, c, h, w = x_nchw.shape
    # NCHW -> NHWC -> [N, H*W, C]
    x_flat = jnp.transpose(x_nchw, (0, 2, 3, 1)).reshape(n, h * w, c)
    feat = backbone_stem(x_flat, params["w_stem"])            # [N, prev_dim] bf16

    h1 = fused_linear_bn(feat, params["w1"], params["g1"], params["b1"],
                         relu=True, affine=True, out_dtype=jnp.bfloat16)
    h2 = fused_linear_bn(h1, params["w2"], params["g2"], params["b2"],
                         relu=True, affine=True, out_dtype=jnp.bfloat16)
    # Linear(prev_dim, dim, bias=True) + BatchNorm1d(dim, affine=False):
    # the bias b3 cancels exactly in the affine-free BN mean subtraction,
    # so it is omitted from the kernel (mathematically identical forward).
    z = fused_linear_bn(h2, params["w3"], params["g3_unused"], params["b3_unused"],
                        relu=False, affine=False, out_dtype=jnp.float32)
    return z                                                   # [N, dim]


def init_params(key, c_in, prev_dim, dim):
    ks = jax.random.split(key, 4)
    scale = 0.05
    return {
        # synthetic backbone stem (stands in for base_encoder conv trunk)
        "w_stem": scale * jax.random.normal(ks[0], (c_in, prev_dim), jnp.float32),
        # projection head (encoder.fc replacement); matmul weights stored bf16
        "w1": (scale * jax.random.normal(ks[1], (prev_dim, prev_dim))).astype(jnp.bfloat16),
        "g1": jnp.ones((1, prev_dim), jnp.float32),
        "b1": jnp.zeros((1, prev_dim), jnp.float32),
        "w2": (scale * jax.random.normal(ks[2], (prev_dim, prev_dim))).astype(jnp.bfloat16),
        "g2": jnp.ones((1, prev_dim), jnp.float32),
        "b2": jnp.zeros((1, prev_dim), jnp.float32),
        "w3": (scale * jax.random.normal(ks[3], (prev_dim, dim))).astype(jnp.bfloat16),
        # b3 (torch Linear bias, requires_grad=False) cancels under the final
        # affine-free BN -> kept here only for parameter fidelity, not used.
        "b3": jnp.zeros((1, dim), jnp.float32),
        # placeholders for the affine-free BatchNorm1d(dim): unused in epilogue.
        "g3_unused": jnp.ones((1, dim), jnp.float32),
        "b3_unused": jnp.zeros((1, dim), jnp.float32),
    }


if __name__ == "__main__":
    # Small shapes consistent with the module: images NCHW, prev_dim hidden, dim output.
    N, C, H, W = 2, 3, 16, 16
    PREV_DIM, DIM = 32, 64          # scaled-down stand-ins for 2048 / 2048

    key = jax.random.PRNGKey(0)
    kx, kp = jax.random.split(key)
    x = jax.random.normal(kx, (N, C, H, W), jnp.float32)
    params = init_params(kp, C, PREV_DIM, DIM)

    z = simsiam_forward(x, params)
    z = jax.block_until_ready(z)
    assert z.shape == (N, DIM) and bool(jnp.all(jnp.isfinite(z)))
    print("KERNEL_OK")
</pallas_src>

<mosaic_0001>
module attributes {stable_mosaic.version = 11 : i64} {
  func.func @_stem_kernel(%arg0: i32, %arg1: memref<2x256x3xf32, #tpu.memory_space<vmem>>, %arg2: memref<3x32xf32, #tpu.memory_space<vmem>>, %arg3: memref<2x32xbf16, #tpu.memory_space<vmem>>) attributes {dimension_semantics = [#tpu.dimension_semantics<parallel>], iteration_bounds = array<i64: 1>, scalar_prefetch = 0 : i64, scratch_operands = 0 : i64, tpu.core_type = #tpu.core_type<tc>, window_params = [{transform_indices = @transform_0, window_bounds = array<i64: 2, 256, 3>}, {pipeline_mode = #tpu.pipeline_mode<synchronous>, transform_indices = @transform_1, window_bounds = array<i64: 3, 32>}, {transform_indices = @transform_2, window_bounds = array<i64: 2, 32>}]} {
    %c0 = arith.constant 0 : index
    %c0_0 = arith.constant 0 : index
    %c0_1 = arith.constant 0 : index
    %0 = vector.load %arg1[%c0, %c0_0, %c0_1] : memref<2x256x3xf32, #tpu.memory_space<vmem>>, vector<2x256x3xf32>
    %1 = vector.shape_cast %0 : vector<2x256x3xf32> to vector<512x3xf32>
    %c0_2 = arith.constant 0 : index
    %c0_3 = arith.constant 0 : index
    %2 = vector.load %arg2[%c0_2, %c0_3] : memref<3x32xf32, #tpu.memory_space<vmem>>, vector<3x32xf32>
    %cst = arith.constant dense<0.000000e+00> : vector<512x32xf32>
    %3 = tpu.matmul %1, %2, %cst {dimension_numbers = #tpu.dot_dimension_numbers<[1], [0], [0], [1], [0, 0, 1, 1], [], []>} : vector<512x3xf32>, vector<3x32xf32>, vector<512x32xf32> -> vector<512x32xf32>
    %cst_4 = arith.constant 0.000000e+00 : f32
    %4 = vector.broadcast %cst_4 : f32 to vector<512x32xf32>
    %5 = arith.maximumf %3, %4 : vector<512x32xf32>
    %6 = vector.shape_cast %5 : vector<512x32xf32> to vector<2x256x32xf32>
    %cst_5 = arith.constant dense<0.000000e+00> : vector<2x32xf32>
    %7 = vector.multi_reduction <add>, %6, %cst_5 [1] : vector<2x256x32xf32> to vector<2x32xf32>
    %cst_6 = arith.constant 2.560000e+02 : f32
    %8 = vector.broadcast %cst_6 : f32 to vector<2x32xf32>
    %9 = arith.divf %7, %8 : vector<2x32xf32>
    %10 = arith.truncf %9 : vector<2x32xf32> to vector<2x32xbf16>
    %c0_7 = arith.constant 0 : index
    %c0_8 = arith.constant 0 : index
    %11 = vector.load %arg3[%c0_7, %c0_8] : memref<2x32xbf16, #tpu.memory_space<vmem>>, vector<2x32xbf16>
    tpu.vector_store %arg3[%c0_7, %c0_8], %10 {strides = array<i32>} : memref<2x32xbf16, #tpu.memory_space<vmem>>, vector<2x32xbf16>,
    return
  }
  func.func @transform_0(%arg0: i32) -> (i32, i32, i32) {
    %c0_i32 = arith.constant 0 : i32
    %c0_i32_0 = arith.constant 0 : i32
    %c0_i32_1 = arith.constant 0 : i32
    return %arg0, %c0_i32, %c0_i32_0 : i32, i32, i32
  }
  func.func @transform_1(%arg0: i32) -> (i32, i32) {
    %c0_i32 = arith.constant 0 : i32
    %c0_i32_0 = arith.constant 0 : i32
    %c0_i32_1 = arith.constant 0 : i32
    return %c0_i32, %c0_i32_0 : i32, i32
  }
  func.func @transform_2(%arg0: i32) -> (i32, i32) {
    %c0_i32 = arith.constant 0 : i32
    %c0_i32_0 = arith.constant 0 : i32
    return %arg0, %c0_i32 : i32, i32
  }
}

</mosaic_0001>

<llo_original>
// kernel: tpu_custom_call.1
$region0: #{tpu_custom_call.1}
  #allocation0 [shape = 'u32[]', space=smem, size = 0x4, offset = 0x4, fixed_abs, tag = 'smem constant byte address 0x4 - core index']
  #allocation1 [shape = 'u32[144,128]{1,0:T(1,128)}', space=vmem, size = 0x12000, scoped, tag = 'internal scratch']
  %s0 = inlined_call_operand.vmem [shape: f32[2,256,3], index: 0, kind: input, shape index: {}]
  %s1 = inlined_call_operand.vmem [shape: f32[3,32], index: 1, kind: input, shape index: {}]
  %s2 = inlined_call_operand.hbm [shape: bf16[2,32], index: 2, kind: output, shape index: {}]
  %s3 = sld [smem:[#allocation0]]
  $region18: #{tpu_custom_call.1} parent=0
    _
  %s5 = ssub.s32 1, %s3
  %s6 = scalar_select 0, %s5, %s3
  $region1: #{tpu_custom_call.1} parent=0
    #allocation2 [shape = 'u8[512]{0}', space=vmem, size = 0x400, scoped, tag = 'output window, operand 0, single buffered']
    #allocation3 [shape = 's32[1]{0}', space=sflag, size = 0x4, scoped, tag = 'scoped memory for tpu_custom_call.1']
    %7 = vsyncpa [#allocation3], 0
    // Predicated region
    $region2: #{tpu_custom_call.1} parent=1 // pred_check
      _
    $region3: #{tpu_custom_call.1} parent=1 // pred_check_branch
      %9 = sbr.rel (0) target = $region5
    $region4: #{tpu_custom_call.1} parent=1 // pred_region
      _
    $region5: #{tpu_custom_call.1} parent=1 // pred_fallthru
      _
    // Predicated region
    $region6: #{tpu_custom_call.1} parent=1 // pred_check
      _
    $region7: #{tpu_custom_call.1} parent=1 // pred_check_branch
      %11 = sbr.rel (0) target = $region9
    $region8: #{tpu_custom_call.1} parent=1 // pred_region
      _
    $region9: #{tpu_custom_call.1} parent=1 // pred_fallthru
      _
    %v12 = vld [vmem:[%s0] sm:$0xff]
    %v13 = vld [vmem:[%s0 + $0x8] sm:$0xff]
    %v14 = vld [vmem:[%s0 + $0x10] sm:$0xff]
    %v15 = vld [vmem:[%s0 + $0x18] sm:$0xff]
    %v16 = vld [vmem:[%s0 + $0x20] sm:$0xff]
    %v17 = vld [vmem:[%s0 + $0x28] sm:$0xff]
    %v18 = vld [vmem:[%s0 + $0x30] sm:$0xff]
    %v19 = vld [vmem:[%s0 + $0x38] sm:$0xff]
    %v20 = vld [vmem:[%s0 + $0x40] sm:$0xff]
    %v21 = vld [vmem:[%s0 + $0x48] sm:$0xff]
    %v22 = vld [vmem:[%s0 + $0x50] sm:$0xff]
    %v23 = vld [vmem:[%s0 + $0x58] sm:$0xff]
    %v24 = vld [vmem:[%s0 + $0x60] sm:$0xff]
    %v25 = vld [vmem:[%s0 + $0x68] sm:$0xff]
    %v26 = vld [vmem:[%s0 + $0x70] sm:$0xff]
    %v27 = vld [vmem:[%s0 + $0x78] sm:$0xff]
    %v28 = vld [vmem:[%s0 + $0x80] sm:$0xff]
    %v29 = vld [vmem:[%s0 + $0x88] sm:$0xff]
    %v30 = vld [vmem:[%s0 + $0x90] sm:$0xff]
    %v31 = vld [vmem:[%s0 + $0x98] sm:$0xff]
    %v32 = vld [vmem:[%s0 + $0xa0] sm:$0xff]
    %v33 = vld [vmem:[%s0 + $0xa8] sm:$0xff]
    %v34 = vld [vmem:[%s0 + $0xb0] sm:$0xff]
    %v35 = vld [vmem:[%s0 + $0xb8] sm:$0xff]
    %v36 = vld [vmem:[%s0 + $0xc0] sm:$0xff]
    %v37 = vld [vmem:[%s0 + $0xc8] sm:$0xff]
    %v38 = vld [vmem:[%s0 + $0xd0] sm:$0xff]
    %v39 = vld [vmem:[%s0 + $0xd8] sm:$0xff]
    %v40 = vld [vmem:[%s0 + $0xe0] sm:$0xff]
    %v41 = vld [vmem:[%s0 + $0xe8] sm:$0xff]
    %v42 = vld [vmem:[%s0 + $0xf0] sm:$0xff]
    %v43 = vld [vmem:[%s0 + $0xf8] sm:$0xff]
    %v44 = vld [vmem:[%s0 + $0x100] sm:$0xff]
    %v45 = vld [vmem:[%s0 + $0x108] sm:$0xff]
    %v46 = vld [vmem:[%s0 + $0x110] sm:$0xff]
    %v47 = vld [vmem:[%s0 + $0x118] sm:$0xff]
    %v48 = vld [vmem:[%s0 + $0x120] sm:$0xff]
    %v49 = vld [vmem:[%s0 + $0x128] sm:$0xff]
    %v50 = vld [vmem:[%s0 + $0x130] sm:$0xff]
    %v51 = vld [vmem:[%s0 + $0x138] sm:$0xff]
    %v52 = vld [vmem:[%s0 + $0x140] sm:$0xff]
    %v53 = vld [vmem:[%s0 + $0x148] sm:$0xff]
    %v54 = vld [vmem:[%s0 + $0x150] sm:$0xff]
    %v55 = vld [vmem:[%s0 + $0x158] sm:$0xff]
    %v56 = vld [vmem:[%s0 + $0x160] sm:$0xff]
    %v57 = vld [vmem:[%s0 + $0x168] sm:$0xff]
    %v58 = vld [vmem:[%s0 + $0x170] sm:$0xff]
    %v59 = vld [vmem:[%s0 + $0x178] sm:$0xff]
    %v60 = vld [vmem:[%s0 + $0x180] sm:$0xff]
    %v61 = vld [vmem:[%s0 + $0x188] sm:$0xff]
    %v62 = vld [vmem:[%s0 + $0x190] sm:$0xff]
    %v63 = vld [vmem:[%s0 + $0x198] sm:$0xff]
    %v64 = vld [vmem:[%s0 + $0x1a0] sm:$0xff]
    %v65 = vld [vmem:[%s0 + $0x1a8] sm:$0xff]
    %v66 = vld [vmem:[%s0 + $0x1b0] sm:$0xff]
    %v67 = vld [vmem:[%s0 + $0x1b8] sm:$0xff]
    %v68 = vld [vmem:[%s0 + $0x1c0] sm:$0xff]
    %v69 = vld [vmem:[%s0 + $0x1c8] sm:$0xff]
    %v70 = vld [vmem:[%s0 + $0x1d0] sm:$0xff]
    %v71 = vld [vmem:[%s0 + $0x1d8] sm:$0xff]
    %v72 = vld [vmem:[%s0 + $0x1e0] sm:$0xff]
    %v73 = vld [vmem:[%s0 + $0x1e8] sm:$0xff]
    %v74 = vld [vmem:[%s0 + $0x1f0] sm:$0xff]
    %v75 = vld [vmem:[%s0 + $0x1f8] sm:$0xff]
    %v76 = vld [vmem:[%s1] sm:$0x7]
    %vm77 = vcmask 23552
    %v79 = vsel %vm77, %v12, 0
    %v82 = vsel %vm77, %v13, 0
    %v85 = vsel %vm77, %v14, 0
    %v88 = vsel %vm77, %v15, 0
    %v91 = vsel %vm77, %v16, 0
    %v94 = vsel %vm77, %v17, 0
    %v97 = vsel %vm77, %v18, 0
    %v100 = vsel %vm77, %v19, 0
    %v103 = vsel %vm77, %v20, 0
    %v106 = vsel %vm77, %v21, 0
    %v109 = vsel %vm77, %v22, 0
    %v112 = vsel %vm77, %v23, 0
    %v115 = vsel %vm77, %v24, 0
    %v118 = vsel %vm77, %v25, 0
    %v121 = vsel %vm77, %v26, 0
    %v124 = vsel %vm77, %v27, 0
    %v127 = vsel %vm77, %v28, 0
    %v130 = vsel %vm77, %v29, 0
    %v133 = vsel %vm77, %v30, 0
    %v136 = vsel %vm77, %v31, 0
    %v139 = vsel %vm77, %v32, 0
    %v142 = vsel %vm77, %v33, 0
    %v145 = vsel %vm77, %v34, 0
    %v148 = vsel %vm77, %v35, 0
    %v151 = vsel %vm77, %v36, 0
    %v154 = vsel %vm77, %v37, 0
    %v157 = vsel %vm77, %v38, 0
    %v160 = vsel %vm77, %v39, 0
    %v163 = vsel %vm77, %v40, 0
    %v166 = vsel %vm77, %v41, 0
    %v169 = vsel %vm77, %v42, 0
    %v172 = vsel %vm77, %v43, 0
    %v175 = vsel %vm77, %v44, 0
    %v178 = vsel %vm77, %v45, 0
    %v181 = vsel %vm77, %v46, 0
    %v184 = vsel %vm77, %v47, 0
    %v187 = vsel %vm77, %v48, 0
    %v190 = vsel %vm77, %v49, 0
    %v193 = vsel %vm77, %v50, 0
    %v196 = vsel %vm77, %v51, 0
    %v199 = vsel %vm77, %v52, 0
    %v202 = vsel %vm77, %v53, 0
    %v205 = vsel %vm77, %v54, 0
    %v208 = vsel %vm77, %v55, 0
    %v211 = vsel %vm77, %v56, 0
    %v214 = vsel %vm77, %v57, 0
    %v217 = vsel %vm77, %v58, 0
    %v220 = vsel %vm77, %v59, 0
    %v223 = vsel %vm77, %v60, 0
    %v226 = vsel %vm77, %v61, 0
    %v229 = vsel %vm77, %v62, 0
    %v232 = vsel %vm77, %v63, 0
    %v235 = vsel %vm77, %v64, 0
    %v238 = vsel %vm77, %v65, 0
    %v241 = vsel %vm77, %v66, 0
    %v244 = vsel %vm77, %v67, 0
    %v247 = vsel %vm77, %v68, 0
    %v250 = vsel %vm77, %v69, 0
    %v253 = vsel %vm77, %v70, 0
    %v256 = vsel %vm77, %v71, 0
    %v259 = vsel %vm77, %v72, 0
    %v262 = vsel %vm77, %v73, 0
    %v265 = vsel %vm77, %v74, 0
    %v268 = vsel %vm77, %v75, 0
    %vm270 = vcmask 1042432
    %v272 = vsel %vm270, %v76, 0
    %274 = vmatprep.subr.mxu0 0.0
    %275 = vmatpush1.msra.mxu0 0.0
    %276 = vmatprep.subr.mxu0 0.0
    %277 = vmatpush1.msra.mxu0 0.0
    %278 = vmatprep.subr.mxu0 0.0
    %279 = vmatpush1.msra.mxu0 0.0
    %280 = vmatprep.subr.mxu0 0.0
    %281 = vmatpush1.msra.mxu0 0.0
    %282 = vmatprep.subr.mxu0 0.0
    %283 = vmatpush1.msra.mxu0 0.0
    %284 = vmatprep.subr.mxu0 0.0
    %285 = vmatpush1.msra.mxu0 0.0
    %286 = vmatprep.subr.mxu0 0.0
    %287 = vmatpush1.msra.mxu0 0.0
    %288 = vmatprep.subr.mxu0 0.0
    %289 = vmatpush1.msra.mxu0 0.0
    %290 = vmatprep.subr.mxu0 0.0
    %291 = vmatpush1.msra.mxu0 0.0
    %292 = vmatprep.subr.mxu0 0.0
    %293 = vmatpush1.msra.mxu0 0.0
    %294 = vmatprep.subr.mxu0 0.0
    %295 = vmatpush1.msra.mxu0 0.0
    %296 = vmatprep.subr.mxu0 0.0
    %297 = vmatpush1.msra.mxu0 0.0
    %298 = vmatprep.subr.mxu0 0.0
    %299 = vmatpush1.msra.mxu0 0.0
    %300 = vmatprep.subr.mxu0 0.0
    %301 = vmatpush1.msra.mxu0 0.0
    %302 = vmatprep.subr.mxu0 0.0
    %303 = vmatpush1.msra.mxu0 0.0
    %304 = vmatprep.subr.mxu0 0.0
    %305 = vmatpush1.msra.mxu0 %v272
    %306 = vmatprep.subr.mxu0 0.0
    %307 = vmatpush2.msra.mxu0 0.0
    %308 = vmatprep.subr.mxu0 0.0
    %309 = vmatpush2.msra.mxu0 0.0
    %310 = vmatprep.subr.mxu0 0.0
    %311 = vmatpush2.msra.mxu0 0.0
    %312 = vmatprep.subr.mxu0 0.0
    %313 = vmatpush2.msra.mxu0 0.0
    %314 = vmatprep.subr.mxu0 0.0
    %315 = vmatpush2.msra.mxu0 0.0
    %316 = vmatprep.subr.mxu0 0.0
    %317 = vmatpush2.msra.mxu0 0.0
    %318 = vmatprep.subr.mxu0 0.0
    %319 = vmatpush2.msra.mxu0 0.0
    %320 = vmatprep.subr.mxu0 0.0
    %321 = vmatpush2.msra.mxu0 0.0
    %322 = vmatprep.subr.mxu0 0.0
    %323 = vmatpush2.msra.mxu0 0.0
    %324 = vmatprep.subr.mxu0 0.0
    %325 = vmatpush2.msra.mxu0 0.0
    %326 = vmatprep.subr.mxu0 0.0
    %327 = vmatpush2.msra.mxu0 0.0
    %328 = vmatprep.subr.mxu0 0.0
    %329 = vmatpush2.msra.mxu0 0.0
    %330 = vmatprep.subr.mxu0 0.0
    %331 = vmatpush2.msra.mxu0 0.0
    %332 = vmatprep.subr.mxu0 0.0
    %333 = vmatpush2.msra.mxu0 0.0
    %334 = vmatprep.subr.mxu0 0.0
    %335 = vmatpush2.msra.mxu0 0.0
    %336 = vmatprep.subr.mxu0 0.0
    %337 = vmatpush2.msra.mxu0 0.0
    %338 = vmatprep.mubr.f32.mxu0 0.0
    %339 = vmatmul.mubr.f32.gmra.mxu0 %v79
    %v340 = vpop.f32.mrf.mxu0
    %v341 = vadd.f32 0.0, %v340
    %v342 = vpop.f32.mrf.mxu0
    %343 = vmatprep.mubr.f32.mxu0 0.0
    %344 = vmatmul.mubr.f32.gmra.mxu0 %v82
    %v345 = vpop.f32.mrf.mxu0
    %v346 = vadd.f32 0.0, %v345
    %v347 = vpop.f32.mrf.mxu0
    %348 = vmatprep.mubr.f32.mxu0 0.0
    %349 = vmatmul.mubr.f32.gmra.mxu0 %v85
    %v350 = vpop.f32.mrf.mxu0
    %v351 = vadd.f32 0.0, %v350
    %v352 = vpop.f32.mrf.mxu0
    %353 = vmatprep.mubr.f32.mxu0 0.0
    %354 = vmatmul.mubr.f32.gmra.mxu0 %v88
    %v355 = vpop.f32.mrf.mxu0
    %v356 = vadd.f32 0.0, %v355
    %v357 = vpop.f32.mrf.mxu0
    %358 = vmatprep.mubr.f32.mxu0 0.0
    %359 = vmatmul.mubr.f32.gmra.mxu0 %v91
    %v360 = vpop.f32.mrf.mxu0
    %v361 = vadd.f32 0.0, %v360
    %v362 = vpop.f32.mrf.mxu0
    %363 = vmatprep.mubr.f32.mxu0 0.0
    %364 = vmatmul.mubr.f32.gmra.mxu0 %v94
    %v365 = vpop.f32.mrf.mxu0
    %v366 = vadd.f32 0.0, %v365
    %v367 = vpop.f32.mrf.mxu0
    %368 = vmatprep.mubr.f32.mxu0 0.0
    %369 = vmatmul.mubr.f32.gmra.mxu0 %v97
    %v370 = vpop.f32.mrf.mxu0
    %v371 = vadd.f32 0.0, %v370
    %v372 = vpop.f32.mrf.mxu0
    %373 = vmatprep.mubr.f32.mxu0 0.0
    %374 = vmatmul.mubr.f32.gmra.mxu0 %v100
    %v375 = vpop.f32.mrf.mxu0
    %v376 = vadd.f32 0.0, %v375
    %v377 = vpop.f32.mrf.mxu0
    %378 = vmatprep.mubr.f32.mxu0 0.0
    %379 = vmatmul.mubr.f32.gmra.mxu0 %v103
    %v380 = vpop.f32.mrf.mxu0
    %v381 = vadd.f32 0.0, %v380
    %v382 = vpop.f32.mrf.mxu0
    %383 = vmatprep.mubr.f32.mxu0 0.0
    %384 = vmatmul.mubr.f32.gmra.mxu0 %v106
    %v385 = vpop.f32.mrf.mxu0
    %v386 = vadd.f32 0.0, %v385
    %v387 = vpop.f32.mrf.mxu0
    %388 = vmatprep.mubr.f32.mxu0 0.0
    %389 = vmatmul.mubr.f32.gmra.mxu0 %v109
    %v390 = vpop.f32.mrf.mxu0
    %v391 = vadd.f32 0.0, %v390
    %v392 = vpop.f32.mrf.mxu0
    %393 = vmatprep.mubr.f32.mxu0 0.0
    %394 = vmatmul.mubr.f32.gmra.mxu0 %v112
    %v395 = vpop.f32.mrf.mxu0
    %v396 = vadd.f32 0.0, %v395
    %v397 = vpop.f32.mrf.mxu0
    %398 = vmatprep.mubr.f32.mxu0 0.0
    %399 = vmatmul.mubr.f32.gmra.mxu0 %v115
    %v400 = vpop.f32.mrf.mxu0
    %v401 = vadd.f32 0.0, %v400
    %v402 = vpop.f32.mrf.mxu0
    %403 = vmatprep.mubr.f32.mxu0 0.0
    %404 = vmatmul.mubr.f32.gmra.mxu0 %v118
    %v405 = vpop.f32.mrf.mxu0
    %v406 = vadd.f32 0.0, %v405
    %v407 = vpop.f32.mrf.mxu0
    %408 = vmatprep.mubr.f32.mxu0 0.0
    %409 = vmatmul.mubr.f32.gmra.mxu0 %v121
    %v410 = vpop.f32.mrf.mxu0
    %v411 = vadd.f32 0.0, %v410
    %v412 = vpop.f32.mrf.mxu0
    %413 = vmatprep.mubr.f32.mxu0 0.0
    %414 = vmatmul.mubr.f32.gmra.mxu0 %v124
    %v415 = vpop.f32.mrf.mxu0
    %v416 = vadd.f32 0.0, %v415
    %v417 = vpop.f32.mrf.mxu0
    %418 = vmatprep.mubr.f32.mxu0 0.0
    %419 = vmatmul.mubr.f32.gmra.mxu0 %v127
    %v420 = vpop.f32.mrf.mxu0
    %v421 = vadd.f32 0.0, %v420
    %v422 = vpop.f32.mrf.mxu0
    %423 = vmatprep.mubr.f32.mxu0 0.0
    %424 = vmatmul.mubr.f32.gmra.mxu0 %v130
    %v425 = vpop.f32.mrf.mxu0
    %v426 = vadd.f32 0.0, %v425
    %v427 = vpop.f32.mrf.mxu0
    %428 = vmatprep.mubr.f32.mxu0 0.0
    %429 = vmatmul.mubr.f32.gmra.mxu0 %v133
    %v430 = vpop.f32.mrf.mxu0
    %v431 = vadd.f32 0.0, %v430
    %v432 = vpop.f32.mrf.mxu0
    %433 = vmatprep.mubr.f32.mxu0 0.0
    %434 = vmatmul.mubr.f32.gmra.mxu0 %v136
    %v435 = vpop.f32.mrf.mxu0
    %v436 = vadd.f32 0.0, %v435
    %v437 = vpop.f32.mrf.mxu0
    %438 = vmatprep.mubr.f32.mxu0 0.0
    %439 = vmatmul.mubr.f32.gmra.mxu0 %v139
    %v440 = vpop.f32.mrf.mxu0
    %v441 = vadd.f32 0.0, %v440
    %v442 = vpop.f32.mrf.mxu0
    %443 = vmatprep.mubr.f32.mxu0 0.0
    %444 = vmatmul.mubr.f32.gmra.mxu0 %v142
    %v445 = vpop.f32.mrf.mxu0
    %v446 = vadd.f32 0.0, %v445
    %v447 = vpop.f32.mrf.mxu0
    %448 = vmatprep.mubr.f32.mxu0 0.0
    %449 = vmatmul.mubr.f32.gmra.mxu0 %v145
    %v450 = vpop.f32.mrf.mxu0
    %v451 = vadd.f32 0.0, %v450
    %v452 = vpop.f32.mrf.mxu0
    %453 = vmatprep.mubr.f32.mxu0 0.0
    %454 = vmatmul.mubr.f32.gmra.mxu0 %v148
    %v455 = vpop.f32.mrf.mxu0
    %v456 = vadd.f32 0.0, %v455
    %v457 = vpop.f32.mrf.mxu0
    %458 = vmatprep.mubr.f32.mxu0 0.0
    %459 = vmatmul.mubr.f32.gmra.mxu0 %v151
    %v460 = vpop.f32.mrf.mxu0
    %v461 = vadd.f32 0.0, %v460
    %v462 = vpop.f32.mrf.mxu0
    %463 = vmatprep.mubr.f32.mxu0 0.0
    %464 = vmatmul.mubr.f32.gmra.mxu0 %v154
    %v465 = vpop.f32.mrf.mxu0
    %v466 = vadd.f32 0.0, %v465
    %v467 = vpop.f32.mrf.mxu0
    %468 = vmatprep.mubr.f32.mxu0 0.0
    %469 = vmatmul.mubr.f32.gmra.mxu0 %v157
    %v470 = vpop.f32.mrf.mxu0
    %v471 = vadd.f32 0.0, %v470
    %v472 = vpop.f32.mrf.mxu0
    %473 = vmatprep.mubr.f32.mxu0 0.0
    %474 = vmatmul.mubr.f32.gmra.mxu0 %v160
    %v475 = vpop.f32.mrf.mxu0
    %v476 = vadd.f32 0.0, %v475
    %v477 = vpop.f32.mrf.mxu0
    %478 = vmatprep.mubr.f32.mxu0 0.0
    %479 = vmatmul.mubr.f32.gmra.mxu0 %v163
    %v480 = vpop.f32.mrf.mxu0
    %v481 = vadd.f32 0.0, %v480
    %v482 = vpop.f32.mrf.mxu0
    %483 = vmatprep.mubr.f32.mxu0 0.0
    %484 = vmatmul.mubr.f32.gmra.mxu0 %v166
    %v485 = vpop.f32.mrf.mxu0
    %v486 = vadd.f32 0.0, %v485
    %v487 = vpop.f32.mrf.mxu0
    %488 = vmatprep.mubr.f32.mxu0 0.0
    %489 = vmatmul.mubr.f32.gmra.mxu0 %v169
    %v490 = vpop.f32.mrf.mxu0
    %v491 = vadd.f32 0.0, %v490
    %v492 = vpop.f32.mrf.mxu0
    %493 = vmatprep.mubr.f32.mxu0 0.0
    %494 = vmatmul.mubr.f32.gmra.mxu0 %v172
    %v495 = vpop.f32.mrf.mxu0
    %v496 = vadd.f32 0.0, %v495
    %v497 = vpop.f32.mrf.mxu0
    %498 = vmatprep.mubr.f32.mxu0 0.0
    %499 = vmatmul.mubr.f32.gmra.mxu0 %v175
    %v500 = vpop.f32.mrf.mxu0
    %v501 = vadd.f32 0.0, %v500
    %v502 = vpop.f32.mrf.mxu0
    %503 = vmatprep.mubr.f32.mxu0 0.0
    %504 = vmatmul.mubr.f32.gmra.mxu0 %v178
    %v505 = vpop.f32.mrf.mxu0
    %v506 = vadd.f32 0.0, %v505
    %v507 = vpop.f32.mrf.mxu0
    %508 = vmatprep.mubr.f32.mxu0 0.0
    %509 = vmatmul.mubr.f32.gmra.mxu0 %v181
    %v510 = vpop.f32.mrf.mxu0
    %v511 = vadd.f32 0.0, %v510
    %v512 = vpop.f32.mrf.mxu0
    %513 = vmatprep.mubr.f32.mxu0 0.0
    %514 = vmatmul.mubr.f32.gmra.mxu0 %v184
    %v515 = vpop.f32.mrf.mxu0
    %v516 = vadd.f32 0.0, %v515
    %v517 = vpop.f32.mrf.mxu0
    %518 = vmatprep.mubr.f32.mxu0 0.0
    %519 = vmatmul.mubr.f32.gmra.mxu0 %v187
    %v520 = vpop.f32.mrf.mxu0
    %v521 = vadd.f32 0.0, %v520
    %v522 = vpop.f32.mrf.mxu0
    %523 = vmatprep.mubr.f32.mxu0 0.0
    %524 = vmatmul.mubr.f32.gmra.mxu0 %v190
    %v525 = vpop.f32.mrf.mxu0
    %v526 = vadd.f32 0.0, %v525
    %v527 = vpop.f32.mrf.mxu0
    %528 = vmatprep.mubr.f32.mxu0 0.0
    %529 = vmatmul.mubr.f32.gmra.mxu0 %v193
    %v530 = vpop.f32.mrf.mxu0
    %v531 = vadd.f32 0.0, %v530
    %v532 = vpop.f32.mrf.mxu0
    %533 = vmatprep.mubr.f32.mxu0 0.0
    %534 = vmatmul.mubr.f32.gmra.mxu0 %v196
    %v535 = vpop.f32.mrf.mxu0
    %v536 = vadd.f32 0.0, %v535
    %v537 = vpop.f32.mrf.mxu0
    %538 = vmatprep.mubr.f32.mxu0 0.0
    %539 = vmatmul.mubr.f32.gmra.mxu0 %v199
    %v540 = vpop.f32.mrf.mxu0
    %v541 = vadd.f32 0.0, %v540
    %v542 = vpop.f32.mrf.mxu0
    %543 = vmatprep.mubr.f32.mxu0 0.0
    %544 = vmatmul.mubr.f32.gmra.mxu0 %v202
    %v545 = vpop.f32.mrf.mxu0
    %v546 = vadd.f32 0.0, %v545
    %v547 = vpop.f32.mrf.mxu0
    %548 = vmatprep.mubr.f32.mxu0 0.0
    %549 = vmatmul.mubr.f32.gmra.mxu0 %v205
    %v550 = vpop.f32.mrf.mxu0
    %v551 = vadd.f32 0.0, %v550
    %v552 = vpop.f32.mrf.mxu0
    %553 = vmatprep.mubr.f32.mxu0 0.0
    %554 = vmatmul.mubr.f32.gmra.mxu0 %v208
    %v555 = vpop.f32.mrf.mxu0
    %v556 = vadd.f32 0.0, %v555
    %v557 = vpop.f32.mrf.mxu0
    %558 = vmatprep.mubr.f32.mxu0 0.0
    %559 = vmatmul.mubr.f32.gmra.mxu0 %v211
    %v560 = vpop.f32.mrf.mxu0
    %v561 = vadd.f32 0.0, %v560
    %v562 = vpop.f32.mrf.mxu0
    %563 = vmatprep.mubr.f32.mxu0 0.0
    %564 = vmatmul.mubr.f32.gmra.mxu0 %v214
    %v565 = vpop.f32.mrf.mxu0
    %v566 = vadd.f32 0.0, %v565
    %v567 = vpop.f32.mrf.mxu0
    %568 = vmatprep.mubr.f32.mxu0 0.0
    %569 = vmatmul.mubr.f32.gmra.mxu0 %v217
    %v570 = vpop.f32.mrf.mxu0
    %v571 = vadd.f32 0.0, %v570
    %v572 = vpop.f32.mrf.mxu0
    %573 = vmatprep.mubr.f32.mxu0 0.0
    %574 = vmatmul.mubr.f32.gmra.mxu0 %v220
    %v575 = vpop.f32.mrf.mxu0
    %v576 = vadd.f32 0.0, %v575
    %v577 = vpop.f32.mrf.mxu0
    %578 = vmatprep.mubr.f32.mxu0 0.0
    %579 = vmatmul.mubr.f32.gmra.mxu0 %v223
    %v580 = vpop.f32.mrf.mxu0
    %v581 = vadd.f32 0.0, %v580
    %v582 = vpop.f32.mrf.mxu0
    %583 = vmatprep.mubr.f32.mxu0 0.0
    %584 = vmatmul.mubr.f32.gmra.mxu0 %v226
    %v585 = vpop.f32.mrf.mxu0
    %v586 = vadd.f32 0.0, %v585
    %v587 = vpop.f32.mrf.mxu0
    %588 = vmatprep.mubr.f32.mxu0 0.0
    %589 = vmatmul.mubr.f32.gmra.mxu0 %v229
    %v590 = vpop.f32.mrf.mxu0
    %v591 = vadd.f32 0.0, %v590
    %v592 = vpop.f32.mrf.mxu0
    %593 = vmatprep.mubr.f32.mxu0 0.0
    %594 = vmatmul.mubr.f32.gmra.mxu0 %v232
    %v595 = vpop.f32.mrf.mxu0
    %v596 = vadd.f32 0.0, %v595
    %v597 = vpop.f32.mrf.mxu0
    %598 = vmatprep.mubr.f32.mxu0 0.0
    %599 = vmatmul.mubr.f32.gmra.mxu0 %v235
    %v600 = vpop.f32.mrf.mxu0
    %v601 = vadd.f32 0.0, %v600
    %v602 = vpop.f32.mrf.mxu0
    %603 = vmatprep.mubr.f32.mxu0 0.0
    %604 = vmatmul.mubr.f32.gmra.mxu0 %v238
    %v605 = vpop.f32.mrf.mxu0
    %v606 = vadd.f32 0.0, %v605
    %v607 = vpop.f32.mrf.mxu0
    %608 = vmatprep.mubr.f32.mxu0 0.0
    %609 = vmatmul.mubr.f32.gmra.mxu0 %v241
    %v610 = vpop.f32.mrf.mxu0
    %v611 = vadd.f32 0.0, %v610
    %v612 = vpop.f32.mrf.mxu0
    %613 = vmatprep.mubr.f32.mxu0 0.0
    %614 = vmatmul.mubr.f32.gmra.mxu0 %v244
    %v615 = vpop.f32.mrf.mxu0
    %v616 = vadd.f32 0.0, %v615
    %v617 = vpop.f32.mrf.mxu0
    %618 = vmatprep.mubr.f32.mxu0 0.0
    %619 = vmatmul.mubr.f32.gmra.mxu0 %v247
    %v620 = vpop.f32.mrf.mxu0
    %v621 = vadd.f32 0.0, %v620
    %v622 = vpop.f32.mrf.mxu0
    %623 = vmatprep.mubr.f32.mxu0 0.0
    %624 = vmatmul.mubr.f32.gmra.mxu0 %v250
    %v625 = vpop.f32.mrf.mxu0
    %v626 = vadd.f32 0.0, %v625
    %v627 = vpop.f32.mrf.mxu0
    %628 = vmatprep.mubr.f32.mxu0 0.0
    %629 = vmatmul.mubr.f32.gmra.mxu0 %v253
    %v630 = vpop.f32.mrf.mxu0
    %v631 = vadd.f32 0.0, %v630
    %v632 = vpop.f32.mrf.mxu0
    %633 = vmatprep.mubr.f32.mxu0 0.0
    %634 = vmatmul.mubr.f32.gmra.mxu0 %v256
    %v635 = vpop.f32.mrf.mxu0
    %v636 = vadd.f32 0.0, %v635
    %v637 = vpop.f32.mrf.mxu0
    %638 = vmatprep.mubr.f32.mxu0 0.0
    %639 = vmatmul.mubr.f32.gmra.mxu0 %v259
    %v640 = vpop.f32.mrf.mxu0
    %v641 = vadd.f32 0.0, %v640
    %v642 = vpop.f32.mrf.mxu0
    %643 = vmatprep.mubr.f32.mxu0 0.0
    %644 = vmatmul.mubr.f32.gmra.mxu0 %v262
    %v645 = vpop.f32.mrf.mxu0
    %v646 = vadd.f32 0.0, %v645
    %v647 = vpop.f32.mrf.mxu0
    %648 = vmatprep.mubr.f32.mxu0 0.0
    %649 = vmatmul.mubr.f32.gmra.mxu0 %v265
    %v650 = vpop.f32.mrf.mxu0
    %v651 = vadd.f32 0.0, %v650
    %v652 = vpop.f32.mrf.mxu0
    %653 = vmatprep.mubr.f32.mxu0 0.0
    %654 = vmatmul.mubr.f32.gmra.mxu0 %v268
    %v655 = vpop.f32.mrf.mxu0
    %v656 = vadd.f32 0.0, %v655
    %v657 = vpop.f32.mrf.mxu0
    %658 = vdwg.mxu0
    %v659 = vmax.f32 %v341, 0.0
    %v660 = vmax.f32 %v346, 0.0
    %v661 = vmax.f32 %v351, 0.0
    %v662 = vmax.f32 %v356, 0.0
    %v663 = vmax.f32 %v361, 0.0
    %v664 = vmax.f32 %v366, 0.0
    %v665 = vmax.f32 %v371, 0.0
    %v666 = vmax.f32 %v376, 0.0
    %v667 = vmax.f32 %v381, 0.0
    %v668 = vmax.f32 %v386, 0.0
    %v669 = vmax.f32 %v391, 0.0
    %v670 = vmax.f32 %v396, 0.0
    %v671 = vmax.f32 %v401, 0.0
    %v672 = vmax.f32 %v406, 0.0
    %v673 = vmax.f32 %v411, 0.0
    %v674 = vmax.f32 %v416, 0.0
    %v675 = vmax.f32 %v421, 0.0
    %v676 = vmax.f32 %v426, 0.0
    %v677 = vmax.f32 %v431, 0.0
    %v678 = vmax.f32 %v436, 0.0
    %v679 = vmax.f32 %v441, 0.0
    %v680 = vmax.f32 %v446, 0.0
    %v681 = vmax.f32 %v451, 0.0
    %v682 = vmax.f32 %v456, 0.0
    %v683 = vmax.f32 %v461, 0.0
    %v684 = vmax.f32 %v466, 0.0
    %v685 = vmax.f32 %v471, 0.0
    %v686 = vmax.f32 %v476, 0.0
    %v687 = vmax.f32 %v481, 0.0
    %v688 = vmax.f32 %v486, 0.0
    %v689 = vmax.f32 %v491, 0.0
    %v690 = vmax.f32 %v496, 0.0
    %v691 = vmax.f32 %v501, 0.0
    %v692 = vmax.f32 %v506, 0.0
    %v693 = vmax.f32 %v511, 0.0
    %v694 = vmax.f32 %v516, 0.0
    %v695 = vmax.f32 %v521, 0.0
    %v696 = vmax.f32 %v526, 0.0
    %v697 = vmax.f32 %v531, 0.0
    %v698 = vmax.f32 %v536, 0.0
    %v699 = vmax.f32 %v541, 0.0
    %v700 = vmax.f32 %v546, 0.0
    %v701 = vmax.f32 %v551, 0.0
    %v702 = vmax.f32 %v556, 0.0
    %v703 = vmax.f32 %v561, 0.0
    %v704 = vmax.f32 %v566, 0.0
    %v705 = vmax.f32 %v571, 0.0
    %v706 = vmax.f32 %v576, 0.0
    %v707 = vmax.f32 %v581, 0.0
    %v708 = vmax.f32 %v586, 0.0
    %v709 = vmax.f32 %v591, 0.0
    %v710 = vmax.f32 %v596, 0.0
    %v711 = vmax.f32 %v601, 0.0
    %v712 = vmax.f32 %v606, 0.0
    %v713 = vmax.f32 %v611, 0.0
    %v714 = vmax.f32 %v616, 0.0
    %v715 = vmax.f32 %v621, 0.0
    %v716 = vmax.f32 %v626, 0.0
    %v717 = vmax.f32 %v631, 0.0
    %v718 = vmax.f32 %v636, 0.0
    %v719 = vmax.f32 %v641, 0.0
    %v720 = vmax.f32 %v646, 0.0
    %v721 = vmax.f32 %v651, 0.0
    %v722 = vmax.f32 %v656, 0.0
    %vm723 = vcmask 261120
    %v724 = vsel %vm723, %v659, 0.0
    %v725 = vsel %vm723, %v660, 0.0
    %v726 = vadd.f32 %v724, %v725
    %v727 = vsel %vm723, %v661, 0.0
    %v728 = vadd.f32 %v726, %v727
    %v729 = vsel %vm723, %v662, 0.0
    %v730 = vadd.f32 %v728, %v729
    %v731 = vsel %vm723, %v663, 0.0
    %v732 = vadd.f32 %v730, %v731
    %v733 = vsel %vm723, %v664, 0.0
    %v734 = vadd.f32 %v732, %v733
    %v735 = vsel %vm723, %v665, 0.0
    %v736 = vadd.f32 %v734, %v735
    %v737 = vsel %vm723, %v666, 0.0
    %v738 = vadd.f32 %v736, %v737
    %v739 = vsel %vm723, %v667, 0.0
    %v740 = vadd.f32 %v738, %v739
    %v741 = vsel %vm723, %v668, 0.0
    %v742 = vadd.f32 %v740, %v741
    %v743 = vsel %vm723, %v669, 0.0
    %v744 = vadd.f32 %v742, %v743
    %v745 = vsel %vm723, %v670, 0.0
    %v746 = vadd.f32 %v744, %v745
    %v747 = vsel %vm723, %v671, 0.0
    %v748 = vadd.f32 %v746, %v747
    %v749 = vsel %vm723, %v672, 0.0
    %v750 = vadd.f32 %v748, %v749
    %v751 = vsel %vm723, %v673, 0.0
    %v752 = vadd.f32 %v750, %v751
    %v753 = vsel %vm723, %v674, 0.0
    %v754 = vadd.f32 %v752, %v753
    %v755 = vsel %vm723, %v675, 0.0
    %v756 = vadd.f32 %v754, %v755
    %v757 = vsel %vm723, %v676, 0.0
    %v758 = vadd.f32 %v756, %v757
    %v759 = vsel %vm723, %v677, 0.0
    %v760 = vadd.f32 %v758, %v759
    %v761 = vsel %vm723, %v678, 0.0
    %v762 = vadd.f32 %v760, %v761
    %v763 = vsel %vm723, %v679, 0.0
    %v764 = vadd.f32 %v762, %v763
    %v765 = vsel %vm723, %v680, 0.0
    %v766 = vadd.f32 %v764, %v765
    %v767 = vsel %vm723, %v681, 0.0
    %v768 = vadd.f32 %v766, %v767
    %v769 = vsel %vm723, %v682, 0.0
    %v770 = vadd.f32 %v768, %v769
    %v771 = vsel %vm723, %v683, 0.0
    %v772 = vadd.f32 %v770, %v771
    %v773 = vsel %vm723, %v684, 0.0
    %v774 = vadd.f32 %v772, %v773
    %v775 = vsel %vm723, %v685, 0.0
    %v776 = vadd.f32 %v774, %v775
    %v777 = vsel %vm723, %v686, 0.0
    %v778 = vadd.f32 %v776, %v777
    %v779 = vsel %vm723, %v687, 0.0
    %v780 = vadd.f32 %v778, %v779
    %v781 = vsel %vm723, %v688, 0.0
    %v782 = vadd.f32 %v780, %v781
    %v783 = vsel %vm723, %v689, 0.0
    %v784 = vadd.f32 %v782, %v783
    %v785 = vsel %vm723, %v690, 0.0
    %v786 = vadd.f32 %v784, %v785
    %v787 = vrot.slane %v786, 4
    %v788 = vadd.f32 %v786, %v787
    %v789 = vrot.slane %v788, 2
    %v790 = vadd.f32 %v788, %v789
    %v791 = vrot.slane %v790, 1
    %v792 = vadd.f32 %v790, %v791
    %v793 = vsel %vm723, %v691, 0.0
    %v794 = vsel %vm723, %v692, 0.0
    %v795 = vadd.f32 %v793, %v794
    %v796 = vsel %vm723, %v693, 0.0
    %v797 = vadd.f32 %v795, %v796
    %v798 = vsel %vm723, %v694, 0.0
    %v799 = vadd.f32 %v797, %v798
    %v800 = vsel %vm723, %v695, 0.0
    %v801 = vadd.f32 %v799, %v800
    %v802 = vsel %vm723, %v696, 0.0
    %v803 = vadd.f32 %v801, %v802
    %v804 = vsel %vm723, %v697, 0.0
    %v805 = vadd.f32 %v803, %v804
    %v806 = vsel %vm723, %v698, 0.0
    %v807 = vadd.f32 %v805, %v806
    %v808 = vsel %vm723, %v699, 0.0
    %v809 = vadd.f32 %v807, %v808
    %v810 = vsel %vm723, %v700, 0.0
    %v811 = vadd.f32 %v809, %v810
    %v812 = vsel %vm723, %v701, 0.0
    %v813 = vadd.f32 %v811, %v812
    %v814 = vsel %vm723, %v702, 0.0
    %v815 = vadd.f32 %v813, %v814
    %v816 = vsel %vm723, %v703, 0.0
    %v817 = vadd.f32 %v815, %v816
    %v818 = vsel %vm723, %v704, 0.0
    %v819 = vadd.f32 %v817, %v818
    %v820 = vsel %vm723, %v705, 0.0
    %v821 = vadd.f32 %v819, %v820
    %v822 = vsel %vm723, %v706, 0.0
    %v823 = vadd.f32 %v821, %v822
    %v824 = vsel %vm723, %v707, 0.0
    %v825 = vadd.f32 %v823, %v824
    %v826 = vsel %vm723, %v708, 0.0
    %v827 = vadd.f32 %v825, %v826
    %v828 = vsel %vm723, %v709, 0.0
    %v829 = vadd.f32 %v827, %v828
    %v830 = vsel %vm723, %v710, 0.0
    %v831 = vadd.f32 %v829, %v830
    %v832 = vsel %vm723, %v711, 0.0
    %v833 = vadd.f32 %v831, %v832
    %v834 = vsel %vm723, %v712, 0.0
    %v835 = vadd.f32 %v833, %v834
    %v836 = vsel %vm723, %v713, 0.0
    %v837 = vadd.f32 %v835, %v836
    %v838 = vsel %vm723, %v714, 0.0
    %v839 = vadd.f32 %v837, %v838
    %v840 = vsel %vm723, %v715, 0.0
    %v841 = vadd.f32 %v839, %v840
    %v842 = vsel %vm723, %v716, 0.0
    %v843 = vadd.f32 %v841, %v842
    %v844 = vsel %vm723, %v717, 0.0
    %v845 = vadd.f32 %v843, %v844
    %v846 = vsel %vm723, %v718, 0.0
    %v847 = vadd.f32 %v845, %v846
    %v848 = vsel %vm723, %v719, 0.0
    %v849 = vadd.f32 %v847, %v848
    %v850 = vsel %vm723, %v720, 0.0
    %v851 = vadd.f32 %v849, %v850
    %v852 = vsel %vm723, %v721, 0.0
    %v853 = vadd.f32 %v851, %v852
    %v854 = vsel %vm723, %v722, 0.0
    %v855 = vadd.f32 %v853, %v854
    %v856 = vrot.slane %v855, 4
    %v857 = vadd.f32 %v855, %v856
    %v858 = vrot.slane %v857, 2
    %v859 = vadd.f32 %v857, %v858
    %v860 = vrot.slane %v859, 1
    %v861 = vadd.f32 %v859, %v860
    %v862 = vrcp.pop 256.0
    %v863 = vmul.f32 %v792, %v862
    %v864 = vmul.f32 %v861, %v862
    %v865 = vpack.c.bf16 %v863, %v863
    %v866 = vpack.c.bf16 %v864, %v864
    %v870 = vunpack.c.l.s4 1966171168
    %v871 = vunpack.c.0.s8 %v870
    %v872 = vlaneseq
    %v873 = vshrl.u32 %v872, 7
    %v874 = vsub.s32 %v871, %v873
    %v875 = vrot.slane %v865, %v874
    %v877 = vunpack.c.l.s4 1966171168
    %v878 = vunpack.c.0.s8 %v877
    %v879 = vlaneseq
    %v880 = vshrl.u32 %v879, 7
    %v881 = vsub.s32 %v878, %v880
    %v882 = vrot.slane %v875, %v881
    %v884 = vunpack.c.l.s4 1966171168
    %v885 = vunpack.c.0.s8 %v884
    %v886 = vlaneseq
    %v887 = vshrl.u32 %v886, 7
    %v888 = vsub.s32 %v885, %v887
    %v889 = vrot.slane %v866, %v888
    %v891 = vunpack.c.l.s4 1966171168
    %v892 = vunpack.c.0.s8 %v891
    %v893 = vlaneseq
    %v894 = vshrl.u32 %v893, 7
    %v895 = vsub.s32 %v892, %v894
    %v896 = vrot.slane %v889, %v895
    %v898 = vunpack.c.l.s4 1935823168
    %v899 = vunpack.c.0.s8 %v898
    %v900 = vlaneseq
    %v901 = vshrl.u32 %v900, 7
    %v902 = vsub.s32 %v899, %v901
    %v903 = vrot.slane %v882, %v902
    %v905 = vunpack.c.l.s4 1935823168
    %v906 = vunpack.c.0.s8 %v905
    %v907 = vlaneseq
    %v908 = vshrl.u32 %v907, 7
    %v909 = vsub.s32 %v906, %v908
    %v910 = vrot.slane %v903, %v909
    %v912 = vunpack.c.l.s4 1935823168
    %v913 = vunpack.c.0.s8 %v912
    %v914 = vlaneseq
    %v915 = vshrl.u32 %v914, 7
    %v916 = vsub.s32 %v913, %v915
    %v917 = vrot.slane %v896, %v916
    %v919 = vunpack.c.l.s4 1935823168
    %v920 = vunpack.c.0.s8 %v919
    %v921 = vlaneseq
    %v922 = vshrl.u32 %v921, 7
    %v923 = vsub.s32 %v920, %v922
    %v924 = vrot.slane %v917, %v923
    %v925 = vunpack.c.l.b16 %v910
    %v926 = vunpack.c.l.b16 %v924
    %v927 = vrot.slane %v926, 7
    %vm928 = vcmask 1041409
    %v929 = vsel %vm928, %v927, %v925
    %v930 = vpack.c.b16 %v929, %v929
    %v932 = vunpack.c.l.s4 1966171168
    %v933 = vunpack.c.0.s8 %v932
    %v934 = vlaneseq
    %v935 = vshrl.u32 %v934, 7
    %v936 = vsub.s32 %v933, %v935
    %v937 = vrot.slane %v930, %v936
    %v939 = vunpack.c.l.s4 1966171168
    %v940 = vunpack.c.0.s8 %v939
    %v941 = vlaneseq
    %v942 = vshrl.u32 %v941, 7
    %v943 = vsub.s32 %v940, %v942
    %v944 = vrot.slane %v937, %v943
    %vm946 = vcmask 253952
    %947 = vst.msk [vmem:[#allocation2] sm:$0x1] %vm946, %v944
    // Predicated region
    $region10: #{tpu_custom_call.1} parent=1 // pred_check
      _
    $region11: #{tpu_custom_call.1} parent=1 // pred_check_branch
      %949 = sbr.rel (0) target = $region13
    $region12: #{tpu_custom_call.1} parent=1 // pred_region
      %s951 = ssub.s32 16, 16
      %952 = vsyncadd [#allocation3], %s951
      %s954 = sshll.u32 [#allocation2], 4
      %s955 = int_to_ptr.vmem [resolvable:$true] %s954
      %957 = dma.vmem_to_hbm [thread:$0]  %s955, 16, %s2, [#allocation3]
    $region13: #{tpu_custom_call.1} parent=1 // pred_fallthru
      _
    // Predicated region
    $region14: #{tpu_custom_call.1} parent=1 // pred_check
      _
    $region15: #{tpu_custom_call.1} parent=1 // pred_check_branch
      %959 = sbr.rel (0) target = $region17
    $region16: #{tpu_custom_call.1} parent=1 // pred_region
      %960 = dma.done [#allocation3], 16
    $region17: #{tpu_custom_call.1} parent=1 // pred_fallthru
      _
    %961 = vsyncpa [#allocation3], 1

</llo_original>
